<compile_context>
chip_gen: v7x
topology: tpu7x:2x2x1
jax: 0.10.0
libtpu: 0.0.40
codegen_flags: <defaults>
</compile_context>

<pallas_src>
import functools

import jax
import jax.numpy as jnp
from jax.experimental import pallas as pl
from jax.experimental.pallas import tpu as pltpu

# Toy shapes -> every operand fits in VMEM as a single whole-array block.
VMEM_SPEC = pl.BlockSpec(memory_space=pltpu.MemorySpace.VMEM)


def _round_up(x, m):
    return (x + m - 1) // m * m


# ----------------------------- fused Pallas kernel -------------------------- #

def _gcn_fused_kernel(a_ref, x_ref, w1_ref, b1_ref, w2_ref, b2_ref,
                      w3_ref, b3_ref, p_ref, wl_ref, bl_ref, o_ref):
    """Whole GCN forward in one kernel.

    bf16 MXU operands, f32 accumulation, f32 VPU/EUP epilogue.
    """
    f32 = jnp.float32
    bf16 = jnp.bfloat16

    a = a_ref[...]            # (Np, Np) bf16 -- loaded once, reused by 3 layers
    x = x_ref[...]            # (Np, 20) bf16

    # layer 1: Fin=20 < Fout=64 -> aggregate first: (A @ X) @ W1
    ax = jnp.dot(a, x, preferred_element_type=f32)                           # (Np, 20)
    h = jnp.dot(ax.astype(bf16), w1_ref[...], preferred_element_type=f32)    # (Np, 64)
    h = jnp.maximum(h + b1_ref[...], 0.0)

    # layer 2: Fin == Fout = 64 (order is cost-neutral): A @ (H @ W2)
    hw = jnp.dot(h.astype(bf16), w2_ref[...], preferred_element_type=f32)    # (Np, 64)
    h = jnp.dot(a, hw.astype(bf16), preferred_element_type=f32)              # (Np, 64)
    h = jnp.maximum(h + b2_ref[...], 0.0)

    # layer 3: Fin=64 < Fout=128 -> aggregate first: (A @ H) @ W3
    ah = jnp.dot(a, h.astype(bf16), preferred_element_type=f32)              # (Np, 64)
    h = jnp.dot(ah.astype(bf16), w3_ref[...], preferred_element_type=f32)    # (Np, 128)
    h = h + b3_ref[...]

    # global mean pool as dense matmul: (Gp, Np) @ (Np, 128)
    g = jnp.dot(p_ref[...], h.astype(bf16), preferred_element_type=f32)      # (Gp, 128)

    # head: linear + log_softmax.
    # TODO(synk): F.dropout(p=0.4) is identity in eval mode; training-mode dropout
    # would use pltpu.prng_seed + pltpu.prng_random_bits here.
    logits = jnp.dot(g.astype(bf16), wl_ref[...], preferred_element_type=f32)
    logits = logits + bl_ref[...]                                            # (Gp, 14)
    m = jnp.max(logits, axis=-1, keepdims=True)
    shifted = logits - m
    lse = jnp.log(jnp.sum(jnp.exp(shifted), axis=-1, keepdims=True))
    o_ref[...] = shifted - lse


# ------------------------------- JAX glue ----------------------------------- #

def build_norm_adj(edge_index, num_nodes):
    """Dense D^{-1/2}(A+I)D^{-1/2} from a (2, E) edge_index (src row, dst row)."""
    src, dst = edge_index[0], edge_index[1]
    a = jnp.zeros((num_nodes, num_nodes), jnp.float32)
    a = a.at[dst, src].add(1.0)                       # messages flow src -> dst
    a = a + jnp.eye(num_nodes, dtype=jnp.float32)     # self-loops
    deg = jnp.sum(a, axis=1)
    d_inv_sqrt = jnp.where(deg > 0, 1.0 / jnp.sqrt(deg), 0.0)
    return d_inv_sqrt[:, None] * a * d_inv_sqrt[None, :]


def build_pool_matrix(batch, num_graphs, num_nodes):
    """(G, N) matrix P with P[g, n] = 1/|graph g| if batch[n] == g else 0."""
    one_hot = (batch[None, :] == jnp.arange(num_graphs)[:, None]).astype(jnp.float32)
    counts = jnp.sum(one_hot, axis=1, keepdims=True)
    return one_hot / jnp.maximum(counts, 1.0)


def precompute_graph(edge_index, batch, num_nodes, num_graphs):
    """Graph-structure operands, built ONCE per batch (hoisted off the fwd path).

    Returns bf16, zero-padded A_hat (Np, Np) and pool matrix (Gp, Np) where
    Np/Gp are rounded up to sublane multiples of 8.  Padded rows/cols are zero
    so they contribute nothing to the aggregation or the pooled means.
    """
    n_pad = _round_up(num_nodes, 8)
    g_pad = _round_up(num_graphs, 8)
    a_hat = build_norm_adj(edge_index, num_nodes)
    pool = build_pool_matrix(batch, num_graphs, num_nodes)
    a_hat_p = jnp.zeros((n_pad, n_pad), jnp.float32).at[:num_nodes, :num_nodes].set(a_hat)
    pool_p = jnp.zeros((g_pad, n_pad), jnp.float32).at[:num_graphs, :num_nodes].set(pool)
    return a_hat_p.astype(jnp.bfloat16), pool_p.astype(jnp.bfloat16)


def glorot(key, shape):
    fan_in, fan_out = shape
    limit = jnp.sqrt(6.0 / (fan_in + fan_out))
    return jax.random.uniform(key, shape, jnp.float32, -limit, limit)


def init_params(key):
    ks = jax.random.split(key, 8)
    return {
        "w1": glorot(ks[0], (20, 64)),   "b1": jnp.zeros((64,), jnp.float32),
        "w2": glorot(ks[1], (64, 64)),   "b2": jnp.zeros((64,), jnp.float32),
        "w3": glorot(ks[2], (64, 128)),  "b3": jnp.zeros((128,), jnp.float32),
        "wl": glorot(ks[3], (128, 14)),
        "bl": jax.random.uniform(ks[4], (14,), jnp.float32,
                                 -1.0 / jnp.sqrt(128.0), 1.0 / jnp.sqrt(128.0)),
    }


def _cost_estimate(n, g, fin, h1, h2, h3, c):
    flops = 2 * (n * n * fin + n * fin * h1          # layer 1
                 + n * h1 * h2 + n * n * h2          # layer 2
                 + n * n * h2 + n * h2 * h3          # layer 3
                 + g * n * h3                        # pool
                 + g * h3 * c)                       # head
    transcendentals = g * (c + 1)                    # exp + log in log_softmax
    bytes_accessed = 2 * (n * n + n * fin + fin * h1 + h1 * h2 + h2 * h3
                          + g * n + h3 * c) + 4 * (h1 + h2 + h3 + c + g * c)
    return pl.CostEstimate(flops=flops, transcendentals=transcendentals,
                           bytes_accessed=bytes_accessed)


@functools.partial(jax.jit, static_argnames=("num_graphs",))
def gcn_forward(params, x, a_hat_p, pool_p, num_graphs):
    """Fused GCN forward.  x: (N, 20) f32; a_hat_p/pool_p from precompute_graph."""
    n = x.shape[0]
    n_pad = a_hat_p.shape[0]
    g_pad = pool_p.shape[0]
    fin = x.shape[1]
    h1 = params["w1"].shape[1]
    h2 = params["w2"].shape[1]
    h3 = params["w3"].shape[1]
    c = params["wl"].shape[1]

    bf16 = jnp.bfloat16
    x_p = jnp.zeros((n_pad, fin), jnp.float32).at[:n, :].set(x).astype(bf16)

    # TODO(synk): for large N, switch to a row-tiled grid over A_hat with
    # BlockSpec((tm, tk)), an accumulator scratch, pl.when init/finalize and
    # dimension_semantics=("parallel", "arbitrary"); whole-array VMEM blocks are
    # only appropriate at these toy sizes.
    out = pl.pallas_call(
        _gcn_fused_kernel,
        out_shape=jax.ShapeDtypeStruct((g_pad, c), jnp.float32),
        in_specs=[VMEM_SPEC] * 11,
        out_specs=VMEM_SPEC,
        cost_estimate=_cost_estimate(n_pad, g_pad, fin, h1, h2, h3, c),
    )(
        a_hat_p, x_p,
        params["w1"].astype(bf16), params["b1"].reshape(1, -1),
        params["w2"].astype(bf16), params["b2"].reshape(1, -1),
        params["w3"].astype(bf16), params["b3"].reshape(1, -1),
        pool_p,
        params["wl"].astype(bf16), params["bl"].reshape(1, -1),
    )
    return out[:num_graphs]     # drop padded graph rows


# --------------------------------- main -------------------------------------- #

if __name__ == "__main__":
    key = jax.random.PRNGKey(0)
    k_x, k_p = jax.random.split(key)

    num_nodes = 8
    num_graphs = 2
    x = jax.random.normal(k_x, (num_nodes, 20), jnp.float32)

    # two small graphs: nodes 0-3 (a 4-cycle) and nodes 4-7 (a path), undirected
    edges = [(0, 1), (1, 2), (2, 3), (3, 0), (4, 5), (5, 6), (6, 7)]
    src = [s for s, d in edges] + [d for s, d in edges]
    dst = [d for s, d in edges] + [s for s, d in edges]
    edge_index = jnp.array([src, dst], dtype=jnp.int32)
    batch = jnp.array([0, 0, 0, 0, 1, 1, 1, 1], dtype=jnp.int32)

    params = init_params(k_p)

    # graph-structure operands built once, reused across forward calls
    a_hat_p, pool_p = precompute_graph(edge_index, batch, num_nodes, num_graphs)

    log_probs = gcn_forward(params, x, a_hat_p, pool_p, num_graphs)
    log_probs = jax.block_until_ready(log_probs)

    assert log_probs.shape == (num_graphs, 14)
    assert bool(jnp.all(jnp.isfinite(log_probs)))
    # log_softmax rows must (exp-)sum to ~1
    assert bool(jnp.allclose(jnp.sum(jnp.exp(log_probs), axis=-1), 1.0, atol=1e-3))
    print("KERNEL_OK")
</pallas_src>

<mosaic_0001>
module attributes {stable_mosaic.version = 11 : i64} {
  func.func @_gcn_fused_kernel(%arg0: memref<8x8xbf16, #tpu.memory_space<vmem>>, %arg1: memref<8x20xbf16, #tpu.memory_space<vmem>>, %arg2: memref<20x64xbf16, #tpu.memory_space<vmem>>, %arg3: memref<1x64xf32, #tpu.memory_space<vmem>>, %arg4: memref<64x64xbf16, #tpu.memory_space<vmem>>, %arg5: memref<1x64xf32, #tpu.memory_space<vmem>>, %arg6: memref<64x128xbf16, #tpu.memory_space<vmem>>, %arg7: memref<1x128xf32, #tpu.memory_space<vmem>>, %arg8: memref<8x8xbf16, #tpu.memory_space<vmem>>, %arg9: memref<128x14xbf16, #tpu.memory_space<vmem>>, %arg10: memref<1x14xf32, #tpu.memory_space<vmem>>, %arg11: memref<8x14xf32, #tpu.memory_space<vmem>>) attributes {dimension_semantics = [], scalar_prefetch = 0 : i64, scratch_operands = 0 : i64, tpu.core_type = #tpu.core_type<tc>} {
    %c0 = arith.constant 0 : index
    %c0_0 = arith.constant 0 : index
    %0 = vector.load %arg0[%c0, %c0_0] : memref<8x8xbf16, #tpu.memory_space<vmem>>, vector<8x8xbf16>
    %c0_1 = arith.constant 0 : index
    %c0_2 = arith.constant 0 : index
    %1 = vector.load %arg1[%c0_1, %c0_2] : memref<8x20xbf16, #tpu.memory_space<vmem>>, vector<8x20xbf16>
    %cst = arith.constant dense<0.000000e+00> : vector<8x20xf32>
    %2 = tpu.matmul %0, %1, %cst {dimension_numbers = #tpu.dot_dimension_numbers<[1], [0], [0], [1], [0, 0, 1, 1], [], []>} : vector<8x8xbf16>, vector<8x20xbf16>, vector<8x20xf32> -> vector<8x20xf32>
    %3 = arith.truncf %2 : vector<8x20xf32> to vector<8x20xbf16>
    %c0_3 = arith.constant 0 : index
    %c0_4 = arith.constant 0 : index
    %4 = vector.load %arg2[%c0_3, %c0_4] : memref<20x64xbf16, #tpu.memory_space<vmem>>, vector<20x64xbf16>
    %cst_5 = arith.constant dense<0.000000e+00> : vector<8x64xf32>
    %5 = tpu.matmul %3, %4, %cst_5 {dimension_numbers = #tpu.dot_dimension_numbers<[1], [0], [0], [1], [0, 0, 1, 1], [], []>} : vector<8x20xbf16>, vector<20x64xbf16>, vector<8x64xf32> -> vector<8x64xf32>
    %c0_6 = arith.constant 0 : index
    %c0_7 = arith.constant 0 : index
    %6 = vector.load %arg3[%c0_6, %c0_7] : memref<1x64xf32, #tpu.memory_space<vmem>>, vector<1x64xf32>
    %7 = vector.broadcast %6 : vector<1x64xf32> to vector<8x64xf32>
    %8 = arith.addf %5, %7 : vector<8x64xf32>
    %cst_8 = arith.constant 0.000000e+00 : f32
    %9 = vector.broadcast %cst_8 : f32 to vector<8x64xf32>
    %10 = arith.maximumf %8, %9 : vector<8x64xf32>
    %11 = arith.truncf %10 : vector<8x64xf32> to vector<8x64xbf16>
    %c0_9 = arith.constant 0 : index
    %c0_10 = arith.constant 0 : index
    %12 = vector.load %arg4[%c0_9, %c0_10] : memref<64x64xbf16, #tpu.memory_space<vmem>>, vector<64x64xbf16>
    %cst_11 = arith.constant dense<0.000000e+00> : vector<8x64xf32>
    %13 = tpu.matmul %11, %12, %cst_11 {dimension_numbers = #tpu.dot_dimension_numbers<[1], [0], [0], [1], [0, 0, 1, 1], [], []>} : vector<8x64xbf16>, vector<64x64xbf16>, vector<8x64xf32> -> vector<8x64xf32>
    %14 = arith.truncf %13 : vector<8x64xf32> to vector<8x64xbf16>
    %cst_12 = arith.constant dense<0.000000e+00> : vector<8x64xf32>
    %15 = tpu.matmul %0, %14, %cst_12 {dimension_numbers = #tpu.dot_dimension_numbers<[1], [0], [0], [1], [0, 0, 1, 1], [], []>} : vector<8x8xbf16>, vector<8x64xbf16>, vector<8x64xf32> -> vector<8x64xf32>
    %c0_13 = arith.constant 0 : index
    %c0_14 = arith.constant 0 : index
    %16 = vector.load %arg5[%c0_13, %c0_14] : memref<1x64xf32, #tpu.memory_space<vmem>>, vector<1x64xf32>
    %17 = vector.broadcast %16 : vector<1x64xf32> to vector<8x64xf32>
    %18 = arith.addf %15, %17 : vector<8x64xf32>
    %cst_15 = arith.constant 0.000000e+00 : f32
    %19 = vector.broadcast %cst_15 : f32 to vector<8x64xf32>
    %20 = arith.maximumf %18, %19 : vector<8x64xf32>
    %21 = arith.truncf %20 : vector<8x64xf32> to vector<8x64xbf16>
    %cst_16 = arith.constant dense<0.000000e+00> : vector<8x64xf32>
    %22 = tpu.matmul %0, %21, %cst_16 {dimension_numbers = #tpu.dot_dimension_numbers<[1], [0], [0], [1], [0, 0, 1, 1], [], []>} : vector<8x8xbf16>, vector<8x64xbf16>, vector<8x64xf32> -> vector<8x64xf32>
    %23 = arith.truncf %22 : vector<8x64xf32> to vector<8x64xbf16>
    %c0_17 = arith.constant 0 : index
    %c0_18 = arith.constant 0 : index
    %24 = vector.load %arg6[%c0_17, %c0_18] : memref<64x128xbf16, #tpu.memory_space<vmem>>, vector<64x128xbf16>
    %cst_19 = arith.constant dense<0.000000e+00> : vector<8x128xf32>
    %25 = tpu.matmul %23, %24, %cst_19 {dimension_numbers = #tpu.dot_dimension_numbers<[1], [0], [0], [1], [0, 0, 1, 1], [], []>} : vector<8x64xbf16>, vector<64x128xbf16>, vector<8x128xf32> -> vector<8x128xf32>
    %c0_20 = arith.constant 0 : index
    %c0_21 = arith.constant 0 : index
    %26 = vector.load %arg7[%c0_20, %c0_21] : memref<1x128xf32, #tpu.memory_space<vmem>>, vector<1x128xf32>
    %27 = vector.broadcast %26 : vector<1x128xf32> to vector<8x128xf32>
    %28 = arith.addf %25, %27 : vector<8x128xf32>
    %c0_22 = arith.constant 0 : index
    %c0_23 = arith.constant 0 : index
    %29 = vector.load %arg8[%c0_22, %c0_23] : memref<8x8xbf16, #tpu.memory_space<vmem>>, vector<8x8xbf16>
    %30 = arith.truncf %28 : vector<8x128xf32> to vector<8x128xbf16>
    %cst_24 = arith.constant dense<0.000000e+00> : vector<8x128xf32>
    %31 = tpu.matmul %29, %30, %cst_24 {dimension_numbers = #tpu.dot_dimension_numbers<[1], [0], [0], [1], [0, 0, 1, 1], [], []>} : vector<8x8xbf16>, vector<8x128xbf16>, vector<8x128xf32> -> vector<8x128xf32>
    %32 = arith.truncf %31 : vector<8x128xf32> to vector<8x128xbf16>
    %c0_25 = arith.constant 0 : index
    %c0_26 = arith.constant 0 : index
    %33 = vector.load %arg9[%c0_25, %c0_26] : memref<128x14xbf16, #tpu.memory_space<vmem>>, vector<128x14xbf16>
    %cst_27 = arith.constant dense<0.000000e+00> : vector<8x14xf32>
    %34 = tpu.matmul %32, %33, %cst_27 {dimension_numbers = #tpu.dot_dimension_numbers<[1], [0], [0], [1], [0, 0, 1, 1], [], []>} : vector<8x128xbf16>, vector<128x14xbf16>, vector<8x14xf32> -> vector<8x14xf32>
    %c0_28 = arith.constant 0 : index
    %c0_29 = arith.constant 0 : index
    %35 = vector.load %arg10[%c0_28, %c0_29] : memref<1x14xf32, #tpu.memory_space<vmem>>, vector<1x14xf32>
    %36 = vector.broadcast %35 : vector<1x14xf32> to vector<8x14xf32>
    %37 = arith.addf %34, %36 : vector<8x14xf32>
    %cst_30 = arith.constant dense<0xFF800000> : vector<8xf32>
    %38 = vector.multi_reduction <maximumf>, %37, %cst_30 [1] : vector<8x14xf32> to vector<8xf32>
    %39 = vector.shape_cast %38 : vector<8xf32> to vector<8x1xf32>
    %40 = vector.broadcast %39 : vector<8x1xf32> to vector<8x14xf32>
    %41 = arith.subf %37, %40 : vector<8x14xf32>
    %42 = math.exp %41 : vector<8x14xf32>
    %cst_31 = arith.constant dense<0.000000e+00> : vector<8xf32>
    %43 = vector.multi_reduction <add>, %42, %cst_31 [1] : vector<8x14xf32> to vector<8xf32>
    %44 = vector.shape_cast %43 : vector<8xf32> to vector<8x1xf32>
    %45 = math.log %44 : vector<8x1xf32>
    %46 = vector.broadcast %45 : vector<8x1xf32> to vector<8x14xf32>
    %47 = arith.subf %41, %46 : vector<8x14xf32>
    %c0_32 = arith.constant 0 : index
    %c0_33 = arith.constant 0 : index
    %48 = vector.load %arg11[%c0_32, %c0_33] : memref<8x14xf32, #tpu.memory_space<vmem>>, vector<8x14xf32>
    tpu.vector_store %arg11[%c0_32, %c0_33], %47 {strides = array<i32>} : memref<8x14xf32, #tpu.memory_space<vmem>>, vector<8x14xf32>,
    return
  }
}

</mosaic_0001>

<llo_original>
// kernel: gcn_forward.1
$region0: #{gcn_forward.1}
  #allocation0 [shape = 'u32[]', space=smem, size = 0x4, offset = 0x4, fixed_abs, tag = 'smem constant byte address 0x4 - core index']
  #allocation1 [shape = 'u32[144,128]{1,0:T(1,128)}', space=vmem, size = 0x12000, scoped, tag = 'internal scratch']
  %s0 = inlined_call_operand.vmem [shape: bf16[8,8], index: 0, kind: input, shape index: {}]
  %s1 = inlined_call_operand.vmem [shape: bf16[8,20], index: 1, kind: input, shape index: {}]
  %s2 = inlined_call_operand.vmem [shape: bf16[20,64], index: 2, kind: input, shape index: {}]
  %s3 = inlined_call_operand.vmem [shape: f32[1,64], index: 3, kind: input, shape index: {}]
  %s4 = inlined_call_operand.vmem [shape: bf16[64,64], index: 4, kind: input, shape index: {}]
  %s5 = inlined_call_operand.vmem [shape: f32[1,64], index: 5, kind: input, shape index: {}]
  %s6 = inlined_call_operand.vmem [shape: bf16[64,128], index: 6, kind: input, shape index: {}]
  %s7 = inlined_call_operand.vmem [shape: f32[1,128], index: 7, kind: input, shape index: {}]
  %s8 = inlined_call_operand.vmem [shape: bf16[8,8], index: 8, kind: input, shape index: {}]
  %s9 = inlined_call_operand.vmem [shape: bf16[128,14], index: 9, kind: input, shape index: {}]
  %s10 = inlined_call_operand.vmem [shape: f32[1,14], index: 10, kind: input, shape index: {}]
  %s11 = inlined_call_operand.vmem [shape: f32[8,14], index: 11, kind: output, shape index: {}]
  %s12 = sld [smem:[#allocation0]]
  $region54: #{gcn_forward.1} parent=0
    _
  %s14 = ssub.s32 1, %s12
  %s15 = scalar_select 0, %s14, %s12
  // Predicated region
  $region2: #{gcn_forward.1} parent=0 // pred_check
    _
  $region3: #{gcn_forward.1} parent=0 // pred_check_branch
    %17 = sbr.rel (0) target = $region5
  $region4: #{gcn_forward.1} parent=0 // pred_region
    _
  $region5: #{gcn_forward.1} parent=0 // pred_fallthru
    _
  // Predicated region
  $region6: #{gcn_forward.1} parent=0 // pred_check
    _
  $region7: #{gcn_forward.1} parent=0 // pred_check_branch
    %19 = sbr.rel (0) target = $region9
  $region8: #{gcn_forward.1} parent=0 // pred_region
    _
  $region9: #{gcn_forward.1} parent=0 // pred_fallthru
    _
  // Predicated region
  $region10: #{gcn_forward.1} parent=0 // pred_check
    _
  $region11: #{gcn_forward.1} parent=0 // pred_check_branch
    %21 = sbr.rel (0) target = $region13
  $region12: #{gcn_forward.1} parent=0 // pred_region
    _
  $region13: #{gcn_forward.1} parent=0 // pred_fallthru
    _
  // Predicated region
  $region14: #{gcn_forward.1} parent=0 // pred_check
    _
  $region15: #{gcn_forward.1} parent=0 // pred_check_branch
    %23 = sbr.rel (0) target = $region17
  $region16: #{gcn_forward.1} parent=0 // pred_region
    _
  $region17: #{gcn_forward.1} parent=0 // pred_fallthru
    _
  // Predicated region
  $region18: #{gcn_forward.1} parent=0 // pred_check
    _
  $region19: #{gcn_forward.1} parent=0 // pred_check_branch
    %25 = sbr.rel (0) target = $region21
  $region20: #{gcn_forward.1} parent=0 // pred_region
    _
  $region21: #{gcn_forward.1} parent=0 // pred_fallthru
    _
  // Predicated region
  $region22: #{gcn_forward.1} parent=0 // pred_check
    _
  $region23: #{gcn_forward.1} parent=0 // pred_check_branch
    %27 = sbr.rel (0) target = $region25
  $region24: #{gcn_forward.1} parent=0 // pred_region
    _
  $region25: #{gcn_forward.1} parent=0 // pred_fallthru
    _
  // Predicated region
  $region26: #{gcn_forward.1} parent=0 // pred_check
    _
  $region27: #{gcn_forward.1} parent=0 // pred_check_branch
    %29 = sbr.rel (0) target = $region29
  $region28: #{gcn_forward.1} parent=0 // pred_region
    _
  $region29: #{gcn_forward.1} parent=0 // pred_fallthru
    _
  // Predicated region
  $region30: #{gcn_forward.1} parent=0 // pred_check
    _
  $region31: #{gcn_forward.1} parent=0 // pred_check_branch
    %31 = sbr.rel (0) target = $region33
  $region32: #{gcn_forward.1} parent=0 // pred_region
    _
  $region33: #{gcn_forward.1} parent=0 // pred_fallthru
    _
  // Predicated region
  $region34: #{gcn_forward.1} parent=0 // pred_check
    _
  $region35: #{gcn_forward.1} parent=0 // pred_check_branch
    %33 = sbr.rel (0) target = $region37
  $region36: #{gcn_forward.1} parent=0 // pred_region
    _
  $region37: #{gcn_forward.1} parent=0 // pred_fallthru
    _
  // Predicated region
  $region38: #{gcn_forward.1} parent=0 // pred_check
    _
  $region39: #{gcn_forward.1} parent=0 // pred_check_branch
    %35 = sbr.rel (0) target = $region41
  $region40: #{gcn_forward.1} parent=0 // pred_region
    _
  $region41: #{gcn_forward.1} parent=0 // pred_fallthru
    _
  // Predicated region
  $region42: #{gcn_forward.1} parent=0 // pred_check
    _
  $region43: #{gcn_forward.1} parent=0 // pred_check_branch
    %37 = sbr.rel (0) target = $region45
  $region44: #{gcn_forward.1} parent=0 // pred_region
    _
  $region45: #{gcn_forward.1} parent=0 // pred_fallthru
    _
  %v39 = vld [vmem:[%s0] sm:$0xf]
  %v40 = vld [vmem:[%s1] sm:$0xf]
  %vm41 = vcmask 64512
  %v43 = vsel %vm41, %v39, 0
  %vm45 = vcmask 1043456
  %v47 = vsel %vm45, %v40, 0
  %49 = vmatprep.subr.bf16.mxu0 0
  %50 = vmatpush1.bf16.msra.mxu0 %v47
  %51 = vmatprep.subr.bf16.mxu0 0
  %52 = vmatpush1.bf16.msra.mxu0 0
  %53 = vmatprep.subr.bf16.mxu0 0
  %54 = vmatpush1.bf16.msra.mxu0 0
  %55 = vmatprep.subr.bf16.mxu0 0
  %56 = vmatpush1.bf16.msra.mxu0 0
  %57 = vmatprep.subr.bf16.mxu0 0
  %58 = vmatpush1.bf16.msra.mxu0 0
  %59 = vmatprep.subr.bf16.mxu0 0
  %60 = vmatpush1.bf16.msra.mxu0 0
  %61 = vmatprep.subr.bf16.mxu0 0
  %62 = vmatpush1.bf16.msra.mxu0 0
  %63 = vmatprep.subr.bf16.mxu0 0
  %64 = vmatpush1.bf16.msra.mxu0 0
  %65 = vmatprep.subr.bf16.mxu0 0
  %66 = vmatpush1.bf16.msra.mxu0 0
  %67 = vmatprep.subr.bf16.mxu0 0
  %68 = vmatpush1.bf16.msra.mxu0 0
  %69 = vmatprep.subr.bf16.mxu0 0
  %70 = vmatpush1.bf16.msra.mxu0 0
  %71 = vmatprep.subr.bf16.mxu0 0
  %72 = vmatpush1.bf16.msra.mxu0 0
  %73 = vmatprep.subr.bf16.mxu0 0
  %74 = vmatpush1.bf16.msra.mxu0 0
  %75 = vmatprep.subr.bf16.mxu0 0
  %76 = vmatpush1.bf16.msra.mxu0 0
  %77 = vmatprep.subr.bf16.mxu0 0
  %78 = vmatpush1.bf16.msra.mxu0 0
  %79 = vmatprep.subr.bf16.mxu0 0
  %80 = vmatpush1.bf16.msra.mxu0 0
  %81 = vmatprep.mubr.bf16.mxu0 0
  %82 = vmatmul.mubr.bf16.gmra.mrb[0].mxu0 %v43
  %v83 = vpop.f32.mrb[0].mxu0
  %v84 = vadd.f32 0.0, %v83
  %v85 = vpop.f32.mrb[0].mxu0
  %v86 = vpop.f32.mrb[0].mxu0
  %v87 = vpop.f32.mrb[0].mxu0
  %88 = vdwg.mxu0
  %v89 = vpack.c.bf16 %v84, %v84
  %v90 = vld [vmem:[%s2] sm:$0xf]
  %v91 = vld [vmem:[%s2 + $0x4] sm:$0xf]
  %v92 = vld [vmem:[%s2 + $0x8] sm:$0x3]
  %v93 = vld [vmem:[%s3] sm:$0x1]
  %v95 = vlaneseq
  %v96 = vshrl.u32 %v95, 7
  %v97 = vsub.s32 0, %v96
  %v98 = vrot.slane %v93, %v97
  %v103 = vunpack.c.l.b16 %v90
  %v104 = vunpack.c.l.b16 %v91
  %v105 = vunpack.c.l.b16 %v92
  %v106 = vpack.c.b16 %v104, %v103
  %v107 = vpack.c.b16 %v105, %v105
  %vm109 = vcmask 162816
  %v111 = vsel %vm109, %v89, 0
  %vm113 = vcmask 1041408
  %v115 = vsel %vm113, %v107, 0
  %117 = vmatprep.subr.bf16.mxu0 0
  %118 = vmatpush1.bf16.msra.mxu0 %v106
  %119 = vmatprep.subr.bf16.mxu0 0
  %120 = vmatpush1.bf16.msra.mxu0 %v115
  %121 = vmatprep.subr.bf16.mxu0 0
  %122 = vmatpush1.bf16.msra.mxu0 0
  %123 = vmatprep.subr.bf16.mxu0 0
  %124 = vmatpush1.bf16.msra.mxu0 0
  %125 = vmatprep.subr.bf16.mxu0 0
  %126 = vmatpush1.bf16.msra.mxu0 0
  %127 = vmatprep.subr.bf16.mxu0 0
  %128 = vmatpush1.bf16.msra.mxu0 0
  %129 = vmatprep.subr.bf16.mxu0 0
  %130 = vmatpush1.bf16.msra.mxu0 0
  %131 = vmatprep.subr.bf16.mxu0 0
  %132 = vmatpush1.bf16.msra.mxu0 0
  %133 = vmatprep.subr.bf16.mxu0 0
  %134 = vmatpush1.bf16.msra.mxu0 0
  %135 = vmatprep.subr.bf16.mxu0 0
  %136 = vmatpush1.bf16.msra.mxu0 0
  %137 = vmatprep.subr.bf16.mxu0 0
  %138 = vmatpush1.bf16.msra.mxu0 0
  %139 = vmatprep.subr.bf16.mxu0 0
  %140 = vmatpush1.bf16.msra.mxu0 0
  %141 = vmatprep.subr.bf16.mxu0 0
  %142 = vmatpush1.bf16.msra.mxu0 0
  %143 = vmatprep.subr.bf16.mxu0 0
  %144 = vmatpush1.bf16.msra.mxu0 0
  %145 = vmatprep.subr.bf16.mxu0 0
  %146 = vmatpush1.bf16.msra.mxu0 0
  %147 = vmatprep.subr.bf16.mxu0 0
  %148 = vmatpush1.bf16.msra.mxu0 0
  %149 = vmatprep.mubr.bf16.mxu0 0
  %150 = vmatmul.mubr.bf16.gmra.mrb[0].mxu0 %v111
  %v151 = vpop.f32.mrb[0].mxu0
  %v152 = vadd.f32 %v98, %v151
  %v153 = vpop.f32.mrb[0].mxu0
  %v154 = vpop.f32.mrb[0].mxu0
  %v155 = vpop.f32.mrb[0].mxu0
  %156 = vdwg.mxu0
  %v157 = vmax.f32 %v152, 0.0
  %v158 = vpack.c.bf16 %v157, %v157
  %v159 = vld [vmem:[%s4] sm:$0xf]
  %v160 = vld [vmem:[%s4 + $0x4] sm:$0xf]
  %v161 = vld [vmem:[%s4 + $0x8] sm:$0xf]
  %v162 = vld [vmem:[%s4 + $0xc] sm:$0xf]
  %v163 = vld [vmem:[%s4 + $0x10] sm:$0xf]
  %v164 = vld [vmem:[%s4 + $0x14] sm:$0xf]
  %v165 = vld [vmem:[%s4 + $0x18] sm:$0xf]
  %v166 = vld [vmem:[%s4 + $0x1c] sm:$0xf]
  %v175 = vunpack.c.l.b16 %v159
  %v176 = vunpack.c.l.b16 %v160
  %v177 = vunpack.c.l.b16 %v161
  %v178 = vunpack.c.l.b16 %v162
  %v179 = vunpack.c.l.b16 %v163
  %v180 = vunpack.c.l.b16 %v164
  %v181 = vunpack.c.l.b16 %v165
  %v182 = vunpack.c.l.b16 %v166
  %v183 = vpack.c.b16 %v176, %v175
  %v184 = vpack.c.b16 %v178, %v177
  %v185 = vpack.c.b16 %v180, %v179
  %v186 = vpack.c.b16 %v182, %v181
  %vm191 = vcmask 523264
  %v193 = vsel %vm191, %v158, 0
  %195 = vmatprep.subr.bf16.mxu0 0
  %196 = vmatpush1.bf16.msra.mxu0 %v183
  %197 = vmatprep.subr.bf16.mxu0 0
  %198 = vmatpush1.bf16.msra.mxu0 %v184
  %199 = vmatprep.subr.bf16.mxu0 0
  %200 = vmatpush1.bf16.msra.mxu0 %v185
  %201 = vmatprep.subr.bf16.mxu0 0
  %202 = vmatpush1.bf16.msra.mxu0 %v186
  %203 = vmatprep.subr.bf16.mxu0 0
  %204 = vmatpush1.bf16.msra.mxu0 0
  %205 = vmatprep.subr.bf16.mxu0 0
  %206 = vmatpush1.bf16.msra.mxu0 0
  %207 = vmatprep.subr.bf16.mxu0 0
  %208 = vmatpush1.bf16.msra.mxu0 0
  %209 = vmatprep.subr.bf16.mxu0 0
  %210 = vmatpush1.bf16.msra.mxu0 0
  %211 = vmatprep.subr.bf16.mxu0 0
  %212 = vmatpush1.bf16.msra.mxu0 0
  %213 = vmatprep.subr.bf16.mxu0 0
  %214 = vmatpush1.bf16.msra.mxu0 0
  %215 = vmatprep.subr.bf16.mxu0 0
  %216 = vmatpush1.bf16.msra.mxu0 0
  %217 = vmatprep.subr.bf16.mxu0 0
  %218 = vmatpush1.bf16.msra.mxu0 0
  %219 = vmatprep.subr.bf16.mxu0 0
  %220 = vmatpush1.bf16.msra.mxu0 0
  %221 = vmatprep.subr.bf16.mxu0 0
  %222 = vmatpush1.bf16.msra.mxu0 0
  %223 = vmatprep.subr.bf16.mxu0 0
  %224 = vmatpush1.bf16.msra.mxu0 0
  %225 = vmatprep.subr.bf16.mxu0 0
  %226 = vmatpush1.bf16.msra.mxu0 0
  %227 = vmatprep.mubr.bf16.mxu0 0
  %228 = vmatmul.mubr.bf16.gmra.mrb[0].mxu0 %v193
  %v229 = vpop.f32.mrb[0].mxu0
  %v230 = vadd.f32 0.0, %v229
  %v231 = vpop.f32.mrb[0].mxu0
  %v232 = vpop.f32.mrb[0].mxu0
  %v233 = vpop.f32.mrb[0].mxu0
  %234 = vdwg.mxu0
  %v235 = vpack.c.bf16 %v230, %v230
  %v236 = vld [vmem:[%s5] sm:$0x1]
  %v238 = vlaneseq
  %v239 = vshrl.u32 %v238, 7
  %v240 = vsub.s32 0, %v239
  %v241 = vrot.slane %v236, %v240
  %v244 = vsel %vm45, %v235, 0
  %246 = vmatprep.subr.bf16.mxu0 0
  %247 = vmatpush1.bf16.msra.mxu0 %v244
  %248 = vmatprep.subr.bf16.mxu0 0
  %249 = vmatpush1.bf16.msra.mxu0 0
  %250 = vmatprep.subr.bf16.mxu0 0
  %251 = vmatpush1.bf16.msra.mxu0 0
  %252 = vmatprep.subr.bf16.mxu0 0
  %253 = vmatpush1.bf16.msra.mxu0 0
  %254 = vmatprep.subr.bf16.mxu0 0
  %255 = vmatpush1.bf16.msra.mxu0 0
  %256 = vmatprep.subr.bf16.mxu0 0
  %257 = vmatpush1.bf16.msra.mxu0 0
  %258 = vmatprep.subr.bf16.mxu0 0
  %259 = vmatpush1.bf16.msra.mxu0 0
  %260 = vmatprep.subr.bf16.mxu0 0
  %261 = vmatpush1.bf16.msra.mxu0 0
  %262 = vmatprep.subr.bf16.mxu0 0
  %263 = vmatpush1.bf16.msra.mxu0 0
  %264 = vmatprep.subr.bf16.mxu0 0
  %265 = vmatpush1.bf16.msra.mxu0 0
  %266 = vmatprep.subr.bf16.mxu0 0
  %267 = vmatpush1.bf16.msra.mxu0 0
  %268 = vmatprep.subr.bf16.mxu0 0
  %269 = vmatpush1.bf16.msra.mxu0 0
  %270 = vmatprep.subr.bf16.mxu0 0
  %271 = vmatpush1.bf16.msra.mxu0 0
  %272 = vmatprep.subr.bf16.mxu0 0
  %273 = vmatpush1.bf16.msra.mxu0 0
  %274 = vmatprep.subr.bf16.mxu0 0
  %275 = vmatpush1.bf16.msra.mxu0 0
  %276 = vmatprep.subr.bf16.mxu0 0
  %277 = vmatpush1.bf16.msra.mxu0 0
  %278 = vmatprep.mubr.bf16.mxu0 0
  %279 = vmatmul.mubr.bf16.gmra.mrb[0].mxu0 %v43
  %v280 = vpop.f32.mrb[0].mxu0
  %v281 = vadd.f32 %v241, %v280
  %v282 = vpop.f32.mrb[0].mxu0
  %v283 = vpop.f32.mrb[0].mxu0
  %v284 = vpop.f32.mrb[0].mxu0
  %285 = vdwg.mxu0
  %v286 = vmax.f32 %v281, 0.0
  %v287 = vpack.c.bf16 %v286, %v286
  %v289 = vsel %vm45, %v287, 0
  %291 = vmatprep.subr.bf16.mxu0 0
  %292 = vmatpush1.bf16.msra.mxu0 %v289
  %293 = vmatprep.subr.bf16.mxu0 0
  %294 = vmatpush1.bf16.msra.mxu0 0
  %295 = vmatprep.subr.bf16.mxu0 0
  %296 = vmatpush1.bf16.msra.mxu0 0
  %297 = vmatprep.subr.bf16.mxu0 0
  %298 = vmatpush1.bf16.msra.mxu0 0
  %299 = vmatprep.subr.bf16.mxu0 0
  %300 = vmatpush1.bf16.msra.mxu0 0
  %301 = vmatprep.subr.bf16.mxu0 0
  %302 = vmatpush1.bf16.msra.mxu0 0
  %303 = vmatprep.subr.bf16.mxu0 0
  %304 = vmatpush1.bf16.msra.mxu0 0
  %305 = vmatprep.subr.bf16.mxu0 0
  %306 = vmatpush1.bf16.msra.mxu0 0
  %307 = vmatprep.subr.bf16.mxu0 0
  %308 = vmatpush1.bf16.msra.mxu0 0
  %309 = vmatprep.subr.bf16.mxu0 0
  %310 = vmatpush1.bf16.msra.mxu0 0
  %311 = vmatprep.subr.bf16.mxu0 0
  %312 = vmatpush1.bf16.msra.mxu0 0
  %313 = vmatprep.subr.bf16.mxu0 0
  %314 = vmatpush1.bf16.msra.mxu0 0
  %315 = vmatprep.subr.bf16.mxu0 0
  %316 = vmatpush1.bf16.msra.mxu0 0
  %317 = vmatprep.subr.bf16.mxu0 0
  %318 = vmatpush1.bf16.msra.mxu0 0
  %319 = vmatprep.subr.bf16.mxu0 0
  %320 = vmatpush1.bf16.msra.mxu0 0
  %321 = vmatprep.subr.bf16.mxu0 0
  %322 = vmatpush1.bf16.msra.mxu0 0
  %323 = vmatprep.mubr.bf16.mxu0 0
  %324 = vmatmul.mubr.bf16.gmra.mrb[0].mxu0 %v43
  %v325 = vpop.f32.mrb[0].mxu0
  %v326 = vadd.f32 0.0, %v325
  %v327 = vpop.f32.mrb[0].mxu0
  %v328 = vpop.f32.mrb[0].mxu0
  %v329 = vpop.f32.mrb[0].mxu0
  %330 = vdwg.mxu0
  %v331 = vpack.c.bf16 %v326, %v326
  %v332 = vld [vmem:[%s6] sm:$0xf]
  %v333 = vld [vmem:[%s6 + $0x4] sm:$0xf]
  %v334 = vld [vmem:[%s6 + $0x8] sm:$0xf]
  %v335 = vld [vmem:[%s6 + $0xc] sm:$0xf]
  %v336 = vld [vmem:[%s6 + $0x10] sm:$0xf]
  %v337 = vld [vmem:[%s6 + $0x14] sm:$0xf]
  %v338 = vld [vmem:[%s6 + $0x18] sm:$0xf]
  %v339 = vld [vmem:[%s6 + $0x1c] sm:$0xf]
  %v340 = vld [vmem:[%s7] sm:$0x1]
  %v342 = vlaneseq
  %v343 = vshrl.u32 %v342, 7
  %v344 = vsub.s32 0, %v343
  %v345 = vrot.slane %v340, %v344
  %v355 = vunpack.c.l.b16 %v332
  %v356 = vunpack.c.l.b16 %v333
  %v357 = vunpack.c.l.b16 %v334
  %v358 = vunpack.c.l.b16 %v335
  %v359 = vunpack.c.l.b16 %v336
  %v360 = vunpack.c.l.b16 %v337
  %v361 = vunpack.c.l.b16 %v338
  %v362 = vunpack.c.l.b16 %v339
  %v363 = vpack.c.b16 %v356, %v355
  %v364 = vpack.c.b16 %v358, %v357
  %v365 = vpack.c.b16 %v360, %v359
  %v366 = vpack.c.b16 %v362, %v361
  %v372 = vsel %vm191, %v331, 0
  %374 = vmatprep.subr.bf16.mxu0 0
  %375 = vmatpush1.bf16.msra.mxu0 %v363
  %376 = vmatprep.subr.bf16.mxu0 0
  %377 = vmatpush1.bf16.msra.mxu0 %v364
  %378 = vmatprep.subr.bf16.mxu0 0
  %379 = vmatpush1.bf16.msra.mxu0 %v365
  %380 = vmatprep.subr.bf16.mxu0 0
  %381 = vmatpush1.bf16.msra.mxu0 %v366
  %382 = vmatprep.subr.bf16.mxu0 0
  %383 = vmatpush1.bf16.msra.mxu0 0
  %384 = vmatprep.subr.bf16.mxu0 0
  %385 = vmatpush1.bf16.msra.mxu0 0
  %386 = vmatprep.subr.bf16.mxu0 0
  %387 = vmatpush1.bf16.msra.mxu0 0
  %388 = vmatprep.subr.bf16.mxu0 0
  %389 = vmatpush1.bf16.msra.mxu0 0
  %390 = vmatprep.subr.bf16.mxu0 0
  %391 = vmatpush1.bf16.msra.mxu0 0
  %392 = vmatprep.subr.bf16.mxu0 0
  %393 = vmatpush1.bf16.msra.mxu0 0
  %394 = vmatprep.subr.bf16.mxu0 0
  %395 = vmatpush1.bf16.msra.mxu0 0
  %396 = vmatprep.subr.bf16.mxu0 0
  %397 = vmatpush1.bf16.msra.mxu0 0
  %398 = vmatprep.subr.bf16.mxu0 0
  %399 = vmatpush1.bf16.msra.mxu0 0
  %400 = vmatprep.subr.bf16.mxu0 0
  %401 = vmatpush1.bf16.msra.mxu0 0
  %402 = vmatprep.subr.bf16.mxu0 0
  %403 = vmatpush1.bf16.msra.mxu0 0
  %404 = vmatprep.subr.bf16.mxu0 0
  %405 = vmatpush1.bf16.msra.mxu0 0
  %406 = vmatprep.mubr.bf16.mxu0 0
  %407 = vmatmul.mubr.bf16.gmra.mrb[0].mxu0 %v372
  %v408 = vpop.f32.mrb[0].mxu0
  %v409 = vadd.f32 %v345, %v408
  %v410 = vpop.f32.mrb[0].mxu0
  %v411 = vpop.f32.mrb[0].mxu0
  %v412 = vpop.f32.mrb[0].mxu0
  %413 = vdwg.mxu0
  %v414 = vld [vmem:[%s8] sm:$0xf]
  %v415 = vpack.c.bf16 %v409, %v409
  %v417 = vsel %vm41, %v414, 0
  %v420 = vsel %vm45, %v415, 0
  %422 = vmatprep.subr.bf16.mxu0 0
  %423 = vmatpush1.bf16.msra.mxu0 %v420
  %424 = vmatprep.subr.bf16.mxu0 0
  %425 = vmatpush1.bf16.msra.mxu0 0
  %426 = vmatprep.subr.bf16.mxu0 0
  %427 = vmatpush1.bf16.msra.mxu0 0
  %428 = vmatprep.subr.bf16.mxu0 0
  %429 = vmatpush1.bf16.msra.mxu0 0
  %430 = vmatprep.subr.bf16.mxu0 0
  %431 = vmatpush1.bf16.msra.mxu0 0
  %432 = vmatprep.subr.bf16.mxu0 0
  %433 = vmatpush1.bf16.msra.mxu0 0
  %434 = vmatprep.subr.bf16.mxu0 0
  %435 = vmatpush1.bf16.msra.mxu0 0
  %436 = vmatprep.subr.bf16.mxu0 0
  %437 = vmatpush1.bf16.msra.mxu0 0
  %438 = vmatprep.subr.bf16.mxu0 0
  %439 = vmatpush1.bf16.msra.mxu0 0
  %440 = vmatprep.subr.bf16.mxu0 0
  %441 = vmatpush1.bf16.msra.mxu0 0
  %442 = vmatprep.subr.bf16.mxu0 0
  %443 = vmatpush1.bf16.msra.mxu0 0
  %444 = vmatprep.subr.bf16.mxu0 0
  %445 = vmatpush1.bf16.msra.mxu0 0
  %446 = vmatprep.subr.bf16.mxu0 0
  %447 = vmatpush1.bf16.msra.mxu0 0
  %448 = vmatprep.subr.bf16.mxu0 0
  %449 = vmatpush1.bf16.msra.mxu0 0
  %450 = vmatprep.subr.bf16.mxu0 0
  %451 = vmatpush1.bf16.msra.mxu0 0
  %452 = vmatprep.subr.bf16.mxu0 0
  %453 = vmatpush1.bf16.msra.mxu0 0
  %454 = vmatprep.mubr.bf16.mxu0 0
  %455 = vmatmul.mubr.bf16.gmra.mrb[0].mxu0 %v417
  %v456 = vpop.f32.mrb[0].mxu0
  %v457 = vadd.f32 0.0, %v456
  %v458 = vpop.f32.mrb[0].mxu0
  %v459 = vpop.f32.mrb[0].mxu0
  %v460 = vpop.f32.mrb[0].mxu0
  %461 = vdwg.mxu0
  %v462 = vpack.c.bf16 %v457, %v457
  %v463 = vld [vmem:[%s9] sm:$0xf]
  %v464 = vld [vmem:[%s9 + $0x4] sm:$0xf]
  %v465 = vld [vmem:[%s9 + $0x8] sm:$0xf]
  %v466 = vld [vmem:[%s9 + $0xc] sm:$0xf]
  %v467 = vld [vmem:[%s9 + $0x10] sm:$0xf]
  %v468 = vld [vmem:[%s9 + $0x14] sm:$0xf]
  %v469 = vld [vmem:[%s9 + $0x18] sm:$0xf]
  %v470 = vld [vmem:[%s9 + $0x1c] sm:$0xf]
  %v471 = vld [vmem:[%s9 + $0x20] sm:$0xf]
  %v472 = vld [vmem:[%s9 + $0x24] sm:$0xf]
  %v473 = vld [vmem:[%s9 + $0x28] sm:$0xf]
  %v474 = vld [vmem:[%s9 + $0x2c] sm:$0xf]
  %v475 = vld [vmem:[%s9 + $0x30] sm:$0xf]
  %v476 = vld [vmem:[%s9 + $0x34] sm:$0xf]
  %v477 = vld [vmem:[%s9 + $0x38] sm:$0xf]
  %v478 = vld [vmem:[%s9 + $0x3c] sm:$0xf]
  %v479 = vld [vmem:[%s10] sm:$0x1]
  %v481 = vlaneseq
  %v482 = vshrl.u32 %v481, 7
  %v483 = vsub.s32 0, %v482
  %v484 = vrot.slane %v479, %v483
  %v502 = vunpack.c.l.b16 %v463
  %v503 = vunpack.c.l.b16 %v464
  %v504 = vunpack.c.l.b16 %v465
  %v505 = vunpack.c.l.b16 %v466
  %v506 = vunpack.c.l.b16 %v467
  %v507 = vunpack.c.l.b16 %v468
  %v508 = vunpack.c.l.b16 %v469
  %v509 = vunpack.c.l.b16 %v470
  %v510 = vunpack.c.l.b16 %v471
  %v511 = vunpack.c.l.b16 %v472
  %v512 = vunpack.c.l.b16 %v473
  %v513 = vunpack.c.l.b16 %v474
  %v514 = vunpack.c.l.b16 %v475
  %v515 = vunpack.c.l.b16 %v476
  %v516 = vunpack.c.l.b16 %v477
  %v517 = vunpack.c.l.b16 %v478
  %v518 = vpack.c.b16 %v503, %v502
  %v519 = vpack.c.b16 %v505, %v504
  %v520 = vpack.c.b16 %v507, %v506
  %v521 = vpack.c.b16 %v509, %v508
  %v522 = vpack.c.b16 %v511, %v510
  %v523 = vpack.c.b16 %v513, %v512
  %v524 = vpack.c.b16 %v515, %v514
  %v525 = vpack.c.b16 %v517, %v516
  %534 = vmatprep.subr.bf16.mxu0 0
  %535 = vmatpush1.bf16.msra.mxu0 %v518
  %536 = vmatprep.subr.bf16.mxu0 0
  %537 = vmatpush1.bf16.msra.mxu0 %v519
  %538 = vmatprep.subr.bf16.mxu0 0
  %539 = vmatpush1.bf16.msra.mxu0 %v520
  %540 = vmatprep.subr.bf16.mxu0 0
  %541 = vmatpush1.bf16.msra.mxu0 %v521
  %542 = vmatprep.subr.bf16.mxu0 0
  %543 = vmatpush1.bf16.msra.mxu0 %v522
  %544 = vmatprep.subr.bf16.mxu0 0
  %545 = vmatpush1.bf16.msra.mxu0 %v523
  %546 = vmatprep.subr.bf16.mxu0 0
  %547 = vmatpush1.bf16.msra.mxu0 %v524
  %548 = vmatprep.subr.bf16.mxu0 0
  %549 = vmatpush1.bf16.msra.mxu0 %v525
  %550 = vmatprep.subr.bf16.mxu0 0
  %551 = vmatpush1.bf16.msra.mxu0 0
  %552 = vmatprep.subr.bf16.mxu0 0
  %553 = vmatpush1.bf16.msra.mxu0 0
  %554 = vmatprep.subr.bf16.mxu0 0
  %555 = vmatpush1.bf16.msra.mxu0 0
  %556 = vmatprep.subr.bf16.mxu0 0
  %557 = vmatpush1.bf16.msra.mxu0 0
  %558 = vmatprep.subr.bf16.mxu0 0
  %559 = vmatpush1.bf16.msra.mxu0 0
  %560 = vmatprep.subr.bf16.mxu0 0
  %561 = vmatpush1.bf16.msra.mxu0 0
  %562 = vmatprep.subr.bf16.mxu0 0
  %563 = vmatpush1.bf16.msra.mxu0 0
  %564 = vmatprep.subr.bf16.mxu0 0
  %565 = vmatpush1.bf16.msra.mxu0 0
  %566 = vmatprep.mubr.bf16.mxu0 0
  %567 = vmatmul.mubr.bf16.gmra.mrb[0].mxu0 %v462
  %v568 = vpop.f32.mrb[0].mxu0
  %v569 = vadd.f32 %v484, %v568
  %v570 = vpop.f32.mrb[0].mxu0
  %v571 = vpop.f32.mrb[0].mxu0
  %v572 = vpop.f32.mrb[0].mxu0
  %573 = vdwg.mxu0
  %vm574 = vcmask 113664
  %v575 = vsel %vm574, %v569, -inf
  %576 = vmax.xlane.f32.xlu0 %v575
  %v577 = vpop.xlane.xlu0 %576
  %v578 = vsub.f32 %v569, %v577
  %v579 = vmul.f32 %v578, 1.442695
  %v580 = vpow.pop %v579
  %v581 = vsel %vm574, %v580, 0.0
  %582 = vadd.xlane.f32.xlu0 %v581
  %v583 = vpop.xlane.xlu0 %582
  %v584 = vlog2.pop %v583
  %v585 = vmul.f32 %v584, 0.6931472
  %v586 = vsub.f32 %v578, %v585
  %587 = vst.msk [vmem:[%s11] sm:$0xff] %vm574, %v586
  // Predicated region
  $region46: #{gcn_forward.1} parent=0 // pred_check
    _
  $region47: #{gcn_forward.1} parent=0 // pred_check_branch
    %589 = sbr.rel (0) target = $region49
  $region48: #{gcn_forward.1} parent=0 // pred_region
    _
  $region49: #{gcn_forward.1} parent=0 // pred_fallthru
    _
  // Predicated region
  $region50: #{gcn_forward.1} parent=0 // pred_check
    _
  $region51: #{gcn_forward.1} parent=0 // pred_check_branch
    %591 = sbr.rel (0) target = $region53
  $region52: #{gcn_forward.1} parent=0 // pred_region
    _
  $region53: #{gcn_forward.1} parent=0 // pred_fallthru
    _

</llo_original>
